<compile_context>
chip_gen: v7x
topology: tpu7x:2x2x1
jax: 0.10.0
libtpu: 0.0.40
codegen_flags: <defaults>
</compile_context>

<pallas_src>
import functools

import jax
import jax.numpy as jnp
from jax.experimental import pallas as pl
from jax.experimental.pallas import tpu as pltpu


def _mean_vfe_kernel(feat_ref, nvox_ref, out_ref, *, num_points, feat_dim):
    """feat_ref: (TN, P*D) lane-dense, nvox_ref: (TN, 1), out_ref: (TN, D)."""
    d = feat_dim
    # Accumulate in f32 (important for bf16 inputs; no-op for f32 inputs).
    x = feat_ref[...].astype(jnp.float32)            # (TN, P*D)

    # Tree-reduce the P point-segments (each D lanes wide) along the lane axis.
    # ceil(log2(P)) passes of static slices + adds; stays in the lane-dense 2-D
    # frame so no layout inflation, works for any P (not just powers of two).
    p_cur = num_points
    while p_cur > 1:
        hi = p_cur // 2
        lo = p_cur - hi                               # = ceil(p_cur / 2)
        s = x[:, : hi * d] + x[:, lo * d : p_cur * d]
        if lo > hi:                                   # odd count: middle segment carried over
            x = jnp.concatenate([s, x[:, hi * d : lo * d]], axis=1)
        else:
            x = s
        p_cur = lo
    # x: (TN, D) point sums in f32.

    # Divide by the per-voxel point count (PyTorch semantics kept: no clamping;
    # padded tail rows were given count 1 in the wrapper so they stay finite).
    n = nvox_ref[...].astype(jnp.float32)             # (TN, 1)
    inv_n = pl.reciprocal(n, approx=False)            # EUP reciprocal, keeps VALU/store slots free
    out_ref[...] = (x * inv_n).astype(out_ref.dtype)


def _choose_tile_n(n_rows, row_bytes, target_block_bytes=1 << 20):
    """Pick a voxel tile that moves ~1 MiB per input block, keeping >=2 grid steps."""
    tile = max(1, target_block_bytes // max(row_bytes, 1))
    tile = min(tile, n_rows)
    # Keep at least 2 grid steps when N allows so v7x's two TensorCores share the work.
    if tile >= n_rows and n_rows > 8:
        tile = -(-n_rows // 2)  # cdiv(n_rows, 2)
    tile = max(8, (tile // 8) * 8)  # sublane multiple
    return tile


def mean_voxel_feature_extractor(features, num_voxels, *, tile_n=None):
    """features: (N, P, D) float, num_voxels: (N,) int -> (N, D) float."""
    N, P, D = features.shape
    row_width = P * D

    # Free, contiguous reshape: lane-dense input rows of width P*D.
    feats2d = features.reshape(N, row_width)
    nvox2d = num_voxels.reshape(N, 1)

    if tile_n is None:
        tile_n = _choose_tile_n(N, row_width * features.dtype.itemsize)

    grid_n = pl.cdiv(N, tile_n)
    n_pad = grid_n * tile_n
    if n_pad != N:
        # Pad the voxel axis so any tile size works; padded counts are 1 to keep
        # the padded rows finite (they are sliced off below anyway).
        feats2d = jnp.pad(feats2d, ((0, n_pad - N), (0, 0)))
        nvox2d = jnp.pad(nvox2d, ((0, n_pad - N), (0, 0)), constant_values=1)

    kernel = functools.partial(_mean_vfe_kernel, num_points=P, feat_dim=D)

    out = pl.pallas_call(
        kernel,
        out_shape=jax.ShapeDtypeStruct((n_pad, D), features.dtype),
        grid_spec=pltpu.PrefetchScalarGridSpec(
            num_scalar_prefetch=0,
            grid=(grid_n,),
            in_specs=[
                pl.BlockSpec((tile_n, row_width), lambda i: (i, 0)),
                pl.BlockSpec((tile_n, 1), lambda i: (i, 0)),
            ],
            out_specs=pl.BlockSpec((tile_n, D), lambda i: (i, 0)),
        ),
        compiler_params=pltpu.CompilerParams(
            dimension_semantics=("parallel",),
        ),
    )(feats2d, nvox2d)

    return out[:N]


def _reference(features, num_voxels):
    return features.sum(axis=1) / num_voxels.astype(features.dtype).reshape(-1, 1)


if __name__ == "__main__":
    key = jax.random.PRNGKey(0)
    k1, k2 = jax.random.split(key)

    # Small shapes consistent with the module: N voxels, P points/voxel, 3+C feats.
    # P*D = 128 so the flattened rows are exactly one vreg wide (lane-dense).
    N, P, D = 256, 32, 4
    features = jax.random.normal(k1, (N, P, D), dtype=jnp.float32)
    num_voxels = jax.random.randint(k2, (N,), minval=1, maxval=P + 1, dtype=jnp.int32)

    out = mean_voxel_feature_extractor(features, num_voxels)
    out = jax.block_until_ready(out)

    ref = _reference(features, num_voxels)
    assert out.shape == (N, D)
    assert jnp.allclose(out, ref, atol=1e-5, rtol=1e-5)
    print("KERNEL_OK")
</pallas_src>

<mosaic_0001>
module attributes {stable_mosaic.version = 11 : i64} {
  func.func @_mean_vfe_kernel(%arg0: i32, %arg1: memref<128x128xf32, #tpu.memory_space<vmem>>, %arg2: memref<128x1xi32, #tpu.memory_space<vmem>>, %arg3: memref<128x4xf32, #tpu.memory_space<vmem>>) attributes {dimension_semantics = [#tpu.dimension_semantics<parallel>], iteration_bounds = array<i64: 2>, scalar_prefetch = 0 : i64, scratch_operands = 0 : i64, tpu.core_type = #tpu.core_type<tc>, window_params = [{transform_indices = @transform_0, window_bounds = array<i64: 128, 128>}, {transform_indices = @transform_1, window_bounds = array<i64: 128, 1>}, {transform_indices = @transform_2, window_bounds = array<i64: 128, 4>}]} {
    %c0 = arith.constant 0 : index
    %c0_0 = arith.constant 0 : index
    %0 = vector.load %arg1[%c0, %c0_0] : memref<128x128xf32, #tpu.memory_space<vmem>>, vector<128x128xf32>
    %1 = vector.extract_strided_slice %0 {offsets = [0, 0], sizes = [128, 64], strides = [1, 1]} : vector<128x128xf32> to vector<128x64xf32>
    %2 = vector.extract_strided_slice %0 {offsets = [0, 64], sizes = [128, 64], strides = [1, 1]} : vector<128x128xf32> to vector<128x64xf32>
    %3 = arith.addf %1, %2 : vector<128x64xf32>
    %4 = vector.extract_strided_slice %3 {offsets = [0, 0], sizes = [128, 32], strides = [1, 1]} : vector<128x64xf32> to vector<128x32xf32>
    %5 = vector.extract_strided_slice %3 {offsets = [0, 32], sizes = [128, 32], strides = [1, 1]} : vector<128x64xf32> to vector<128x32xf32>
    %6 = arith.addf %4, %5 : vector<128x32xf32>
    %7 = vector.extract_strided_slice %6 {offsets = [0, 0], sizes = [128, 16], strides = [1, 1]} : vector<128x32xf32> to vector<128x16xf32>
    %8 = vector.extract_strided_slice %6 {offsets = [0, 16], sizes = [128, 16], strides = [1, 1]} : vector<128x32xf32> to vector<128x16xf32>
    %9 = arith.addf %7, %8 : vector<128x16xf32>
    %10 = vector.extract_strided_slice %9 {offsets = [0, 0], sizes = [128, 8], strides = [1, 1]} : vector<128x16xf32> to vector<128x8xf32>
    %11 = vector.extract_strided_slice %9 {offsets = [0, 8], sizes = [128, 8], strides = [1, 1]} : vector<128x16xf32> to vector<128x8xf32>
    %12 = arith.addf %10, %11 : vector<128x8xf32>
    %13 = vector.extract_strided_slice %12 {offsets = [0, 0], sizes = [128, 4], strides = [1, 1]} : vector<128x8xf32> to vector<128x4xf32>
    %14 = vector.extract_strided_slice %12 {offsets = [0, 4], sizes = [128, 4], strides = [1, 1]} : vector<128x8xf32> to vector<128x4xf32>
    %15 = arith.addf %13, %14 : vector<128x4xf32>
    %c0_1 = arith.constant 0 : index
    %c0_2 = arith.constant 0 : index
    %16 = vector.load %arg2[%c0_1, %c0_2] : memref<128x1xi32, #tpu.memory_space<vmem>>, vector<128x1xi32>
    %17 = arith.sitofp %16 : vector<128x1xi32> to vector<128x1xf32>
    %18 = tpu.reciprocal %17 : vector<128x1xf32> -> vector<128x1xf32>
    %19 = vector.broadcast %18 : vector<128x1xf32> to vector<128x4xf32>
    %20 = arith.mulf %15, %19 : vector<128x4xf32>
    %c0_3 = arith.constant 0 : index
    %c0_4 = arith.constant 0 : index
    %21 = vector.load %arg3[%c0_3, %c0_4] : memref<128x4xf32, #tpu.memory_space<vmem>>, vector<128x4xf32>
    tpu.vector_store %arg3[%c0_3, %c0_4], %20 {strides = array<i32>} : memref<128x4xf32, #tpu.memory_space<vmem>>, vector<128x4xf32>,
    return
  }
  func.func @transform_0(%arg0: i32) -> (i32, i32) {
    %c0_i32 = arith.constant 0 : i32
    %c0_i32_0 = arith.constant 0 : i32
    return %arg0, %c0_i32 : i32, i32
  }
  func.func @transform_1(%arg0: i32) -> (i32, i32) {
    %c0_i32 = arith.constant 0 : i32
    %c0_i32_0 = arith.constant 0 : i32
    return %arg0, %c0_i32 : i32, i32
  }
  func.func @transform_2(%arg0: i32) -> (i32, i32) {
    %c0_i32 = arith.constant 0 : i32
    %c0_i32_0 = arith.constant 0 : i32
    return %arg0, %c0_i32 : i32, i32
  }
}

</mosaic_0001>

<llo_original>
// kernel: tpu_custom_call.1
$region0: #{tpu_custom_call.1}
  #allocation0 [shape = 'u32[]', space=smem, size = 0x4, offset = 0x4, fixed_abs, tag = 'smem constant byte address 0x4 - core index']
  #allocation1 [shape = 'u32[144,128]{1,0:T(1,128)}', space=vmem, size = 0x12000, scoped, tag = 'internal scratch']
  %s0 = inlined_call_operand.vmem [shape: f32[256,128], index: 0, kind: input, shape index: {}]
  %s1 = inlined_call_operand.vmem [shape: s32[256,1], index: 1, kind: input, shape index: {}]
  %s2 = inlined_call_operand.vmem [shape: f32[256,4], index: 2, kind: output, shape index: {}]
  %s3 = sld [smem:[#allocation0]]
  $region41: #{tpu_custom_call.1} parent=0
    _
  %s5 = ssub.s32 1, %s3
  %s6 = scalar_select 0, %s5, %s3
  loop: start=0, step=1, limit=4
  $region2: #{tpu_custom_call.1} parent=0 // loop_pre_header
    _
  $region3: #{tpu_custom_call.1} parent=0 // loop_header
    %s8 = sphi 0, %s12
    %p9 = scmp.ge.s32.totalorder %s8, 4
    %s18 = sphi 0, %s20
    %s21 = sphi 0, %s18
    %s22 = sphi 0, %s21
    %s38 = sphi 0, %s22
    %s44 = sphi 0, %s46
    %s47 = sphi 0, %s44
    %s48 = sphi 0, %s47
    %s64 = sphi 0, %s48
    %s70 = sphi 0, %s72
    %s73 = sphi 0, %s70
    %s74 = sphi 0, %s73
    %s90 = sphi 0, %s74
  $region4: #{tpu_custom_call.1} parent=0 // loop_header_branch
    %11 = sbr.rel (%p9) target = $region8
  $region5: #{tpu_custom_call.1} parent=0 // loop_body
    %s13 = ssub.s32 %s8, 1
    %s14 = ssub.s32 %s8, 2
    %s15 = sadd.s32 %s8, 1
    %s16 = ssub.s32 %s8, %s15
    %p17 = scmp.eq.s32.totalorder %s16, 0
    %s19 = sadd.s32 %s18, 1
    %s20 = scalar_select %p17, %s18, %s19
    %p23 = pneg %p17
    %p24 = scmp.eq.s32.totalorder %s8, 1
    %p25 = por %p23, %p24
    %p26 = scmp.ne.s32.totalorder %s18, %s21
    %p27 = scmp.eq.s32.totalorder %s8, 0
    %p28 = por %p26, %p27
    %p29 = scmp.ne.s32.totalorder %s18, %s21
    %p30 = scmp.eq.s32.totalorder %s13, 1
    %p31 = por %p29, %p30
    %p32 = scmp.ne.s32.totalorder %s21, %s22
    %p33 = scmp.eq.s32.totalorder %s13, 0
    %p34 = por %p32, %p33
    %p35 = scmp.ne.s32.totalorder %s21, %s22
    %p36 = scmp.eq.s32.totalorder %s14, 1
    %p37 = por %p35, %p36
    %p39 = scmp.ne.s32.totalorder %s22, %s38
    %p40 = scmp.eq.s32.totalorder %s14, 0
    %p41 = por %p39, %p40
    %s42 = ssub.s32 %s8, %s15
    %p43 = scmp.eq.s32.totalorder %s42, 0
    %s45 = sadd.s32 %s44, 1
    %s46 = scalar_select %p43, %s44, %s45
    %p49 = pneg %p43
    %p50 = scmp.eq.s32.totalorder %s8, 1
    %p51 = por %p49, %p50
    %p52 = scmp.ne.s32.totalorder %s44, %s47
    %p53 = scmp.eq.s32.totalorder %s8, 0
    %p54 = por %p52, %p53
    %p55 = scmp.ne.s32.totalorder %s44, %s47
    %p56 = scmp.eq.s32.totalorder %s13, 1
    %p57 = por %p55, %p56
    %p58 = scmp.ne.s32.totalorder %s47, %s48
    %p59 = scmp.eq.s32.totalorder %s13, 0
    %p60 = por %p58, %p59
    %p61 = scmp.ne.s32.totalorder %s47, %s48
    %p62 = scmp.eq.s32.totalorder %s14, 1
    %p63 = por %p61, %p62
    %p65 = scmp.ne.s32.totalorder %s48, %s64
    %p66 = scmp.eq.s32.totalorder %s14, 0
    %p67 = por %p65, %p66
    %s68 = ssub.s32 %s8, %s15
    %p69 = scmp.eq.s32.totalorder %s68, 0
    %s71 = sadd.s32 %s70, 1
    %s72 = scalar_select %p69, %s70, %s71
    %p75 = pneg %p69
    %p76 = scmp.eq.s32.totalorder %s8, 1
    %p77 = por %p75, %p76
    %p78 = scmp.ne.s32.totalorder %s70, %s73
    %p79 = scmp.eq.s32.totalorder %s8, 0
    %p80 = por %p78, %p79
    %p81 = scmp.ne.s32.totalorder %s70, %s73
    %p82 = scmp.eq.s32.totalorder %s13, 1
    %p83 = por %p81, %p82
    %p84 = scmp.ne.s32.totalorder %s73, %s74
    %p85 = scmp.eq.s32.totalorder %s13, 0
    %p86 = por %p84, %p85
    %p87 = scmp.ne.s32.totalorder %s73, %s74
    %p88 = scmp.eq.s32.totalorder %s14, 1
    %p89 = por %p87, %p88
    %p91 = scmp.ne.s32.totalorder %s74, %s90
    %p92 = scmp.eq.s32.totalorder %s14, 0
    %p93 = por %p91, %p92
    %p94 = scmp.le.s32.totalorder 1, %s8
    %p95 = scmp.lt.s32.totalorder %s8, 3
    %p96 = pnand %p94, %p95
    %p97 = pneg %p96
    // Predicated region
    $region9: #{tpu_custom_call.1} parent=5 // pred_check
      _
    $region10: #{tpu_custom_call.1} parent=5 // pred_check_branch
      %99 = sbr.rel (%p96) target = $region12
    $region11: #{tpu_custom_call.1} parent=5 // pred_region
      %s100 = ssub.s32 %s8, 1
    $region12: #{tpu_custom_call.1} parent=5 // pred_fallthru
      _
    %p101 = scmp.lt.s32.totalorder %s8, 2
    // Predicated region
    $region13: #{tpu_custom_call.1} parent=5 // pred_check
      %p102 = pneg %p101
    $region14: #{tpu_custom_call.1} parent=5 // pred_check_branch
      %104 = sbr.rel (%p102) target = $region16
    $region15: #{tpu_custom_call.1} parent=5 // pred_region
      // Predicated region
      $region17: #{tpu_custom_call.1} parent=15 // pred_check
        %p105 = pneg %p28
      $region18: #{tpu_custom_call.1} parent=15 // pred_check_branch
        %107 = sbr.rel (%p105) target = $region20
      $region19: #{tpu_custom_call.1} parent=15 // pred_region
        %s108 = smul.u32 16, %s8
        %p109 = scmp.lt.s32.totalorder %s108, 31
        %s110 = scalar_select %p109, %s108, 31
        %s111 = smul.addr %s110, 8
        %s112 = scalar_lea.vmem %s0, %s111
        %s113 = smul.u32 16, %s8
      $region20: #{tpu_custom_call.1} parent=15 // pred_fallthru
        _
      // Predicated region
      $region21: #{tpu_custom_call.1} parent=15 // pred_check
        %p114 = pneg %p54
      $region22: #{tpu_custom_call.1} parent=15 // pred_check_branch
        %116 = sbr.rel (%p114) target = $region24
      $region23: #{tpu_custom_call.1} parent=15 // pred_region
        %s117 = smul.u32 16, %s8
        %p118 = scmp.lt.s32.totalorder %s117, 31
        %s119 = scalar_select %p118, %s117, 31
        %s120 = smul.addr %s119, 8
        %s121 = scalar_lea.vmem %s1, %s120
        %s122 = smul.u32 16, %s8
      $region24: #{tpu_custom_call.1} parent=15 // pred_fallthru
        _
    $region16: #{tpu_custom_call.1} parent=5 // pred_fallthru
      _
    %p123 = scmp.le.s32.totalorder 1, %s8
    %p124 = scmp.lt.s32.totalorder %s8, 3
    %p125 = pnand %p123, %p124
    %p126 = pneg %p125
    // Predicated region
    $region25: #{tpu_custom_call.1} parent=5 // pred_check
      _
    $region26: #{tpu_custom_call.1} parent=5 // pred_check_branch
      %128 = sbr.rel (%p125) target = $region28
    $region27: #{tpu_custom_call.1} parent=5 // pred_region
      %s129 = ssub.s32 %s8, 1
      %s130 = smul.u32 16, %s13
      %p131 = scmp.lt.s32.totalorder %s130, 31
      %s132 = scalar_select %p131, %s130, 31
      %s133 = smul.addr %s132, 8
      %s134 = scalar_lea.vmem %s0, %s133
      %p135 = pneg %p34
      %p136 = pneg %p31
      %s137 = smul.u32 16, %s13
      %p138 = scmp.lt.s32.totalorder %s137, 31
      %s139 = scalar_select %p138, %s137, 31
      %s140 = smul.addr %s139, 8
      %s141 = scalar_lea.vmem %s1, %s140
      %p142 = pneg %p60
      %p143 = pneg %p57
      %p144 = pneg %p86
      %p145 = pneg %p83
      %s146 = smul.u32 16, %s13
      %p147 = scmp.lt.s32.totalorder %s146, 31
      %s148 = scalar_select %p147, %s146, 31
      %s149 = smul.addr %s148, 8
      %s150 = scalar_lea.vmem %s2, %s149
      %s151 = smul.u32 16, %s13
      %p152 = scmp.lt.s32.totalorder %s151, 31
      %s153 = scalar_select %p152, %s151, 31
      %s154 = smul.addr %s153, 8
      %s155 = scalar_lea.vmem %s0, %s154
      %s156 = smul.u32 16, %s13
      %s157 = smul.u32 16, %s13
      %p158 = scmp.lt.s32.totalorder %s157, 31
      %s159 = scalar_select %p158, %s157, 31
      %s160 = smul.addr %s159, 8
      %s161 = scalar_lea.vmem %s1, %s160
      %s162 = smul.u32 16, %s13
      %s163 = smul.u32 16, %s13
      %p164 = scmp.lt.s32.totalorder %s163, 31
      %s165 = scalar_select %p164, %s163, 31
      %s166 = smul.addr %s165, 8
      %s167 = scalar_lea.vmem %s2, %s166
      %s168 = smul.u32 16, %s13
      %v169 = vld [vmem:[%s155] sm:$0xff]
      %v170 = vld [vmem:[%s155 + $0x8] sm:$0xff]
      %v171 = vld [vmem:[%s155 + $0x10] sm:$0xff]
      %v172 = vld [vmem:[%s155 + $0x18] sm:$0xff]
      %v173 = vld [vmem:[%s155 + $0x20] sm:$0xff]
      %v174 = vld [vmem:[%s155 + $0x28] sm:$0xff]
      %v175 = vld [vmem:[%s155 + $0x30] sm:$0xff]
      %v176 = vld [vmem:[%s155 + $0x38] sm:$0xff]
      %v177 = vld [vmem:[%s155 + $0x40] sm:$0xff]
      %v178 = vld [vmem:[%s155 + $0x48] sm:$0xff]
      %v179 = vld [vmem:[%s155 + $0x50] sm:$0xff]
      %v180 = vld [vmem:[%s155 + $0x58] sm:$0xff]
      %v181 = vld [vmem:[%s155 + $0x60] sm:$0xff]
      %v182 = vld [vmem:[%s155 + $0x68] sm:$0xff]
      %v183 = vld [vmem:[%s155 + $0x70] sm:$0xff]
      %v184 = vld [vmem:[%s155 + $0x78] sm:$0xff]
      %201 = vrot.lane.b32.xlu0 %v169, 64
      %v202 = vpop.permute.xlu0 %201
      %203 = vrot.lane.b32.xlu0 %v170, 64
      %v204 = vpop.permute.xlu0 %203
      %205 = vrot.lane.b32.xlu0 %v171, 64
      %v206 = vpop.permute.xlu0 %205
      %207 = vrot.lane.b32.xlu0 %v172, 64
      %v208 = vpop.permute.xlu0 %207
      %209 = vrot.lane.b32.xlu0 %v173, 64
      %v210 = vpop.permute.xlu0 %209
      %211 = vrot.lane.b32.xlu0 %v174, 64
      %v212 = vpop.permute.xlu0 %211
      %213 = vrot.lane.b32.xlu0 %v175, 64
      %v214 = vpop.permute.xlu0 %213
      %215 = vrot.lane.b32.xlu0 %v176, 64
      %v216 = vpop.permute.xlu0 %215
      %217 = vrot.lane.b32.xlu0 %v177, 64
      %v218 = vpop.permute.xlu0 %217
      %219 = vrot.lane.b32.xlu0 %v178, 64
      %v220 = vpop.permute.xlu0 %219
      %221 = vrot.lane.b32.xlu0 %v179, 64
      %v222 = vpop.permute.xlu0 %221
      %223 = vrot.lane.b32.xlu0 %v180, 64
      %v224 = vpop.permute.xlu0 %223
      %225 = vrot.lane.b32.xlu0 %v181, 64
      %v226 = vpop.permute.xlu0 %225
      %227 = vrot.lane.b32.xlu0 %v182, 64
      %v228 = vpop.permute.xlu0 %227
      %229 = vrot.lane.b32.xlu0 %v183, 64
      %v230 = vpop.permute.xlu0 %229
      %231 = vrot.lane.b32.xlu0 %v184, 64
      %v232 = vpop.permute.xlu0 %231
      %v249 = vadd.f32 %v169, %v202
      %v250 = vadd.f32 %v170, %v204
      %v251 = vadd.f32 %v171, %v206
      %v252 = vadd.f32 %v172, %v208
      %v253 = vadd.f32 %v173, %v210
      %v254 = vadd.f32 %v174, %v212
      %v255 = vadd.f32 %v175, %v214
      %v256 = vadd.f32 %v176, %v216
      %v257 = vadd.f32 %v177, %v218
      %v258 = vadd.f32 %v178, %v220
      %v259 = vadd.f32 %v179, %v222
      %v260 = vadd.f32 %v180, %v224
      %v261 = vadd.f32 %v181, %v226
      %v262 = vadd.f32 %v182, %v228
      %v263 = vadd.f32 %v183, %v230
      %v264 = vadd.f32 %v184, %v232
      %281 = vrot.lane.b32.xlu0 %v249, 96
      %v282 = vpop.permute.xlu0 %281
      %283 = vrot.lane.b32.xlu0 %v250, 96
      %v284 = vpop.permute.xlu0 %283
      %285 = vrot.lane.b32.xlu0 %v251, 96
      %v286 = vpop.permute.xlu0 %285
      %287 = vrot.lane.b32.xlu0 %v252, 96
      %v288 = vpop.permute.xlu0 %287
      %289 = vrot.lane.b32.xlu0 %v253, 96
      %v290 = vpop.permute.xlu0 %289
      %291 = vrot.lane.b32.xlu0 %v254, 96
      %v292 = vpop.permute.xlu0 %291
      %293 = vrot.lane.b32.xlu0 %v255, 96
      %v294 = vpop.permute.xlu0 %293
      %295 = vrot.lane.b32.xlu0 %v256, 96
      %v296 = vpop.permute.xlu0 %295
      %297 = vrot.lane.b32.xlu0 %v257, 96
      %v298 = vpop.permute.xlu0 %297
      %299 = vrot.lane.b32.xlu0 %v258, 96
      %v300 = vpop.permute.xlu0 %299
      %301 = vrot.lane.b32.xlu0 %v259, 96
      %v302 = vpop.permute.xlu0 %301
      %303 = vrot.lane.b32.xlu0 %v260, 96
      %v304 = vpop.permute.xlu0 %303
      %305 = vrot.lane.b32.xlu0 %v261, 96
      %v306 = vpop.permute.xlu0 %305
      %307 = vrot.lane.b32.xlu0 %v262, 96
      %v308 = vpop.permute.xlu0 %307
      %309 = vrot.lane.b32.xlu0 %v263, 96
      %v310 = vpop.permute.xlu0 %309
      %311 = vrot.lane.b32.xlu0 %v264, 96
      %v312 = vpop.permute.xlu0 %311
      %v329 = vadd.f32 %v249, %v282
      %v330 = vadd.f32 %v250, %v284
      %v331 = vadd.f32 %v251, %v286
      %v332 = vadd.f32 %v252, %v288
      %v333 = vadd.f32 %v253, %v290
      %v334 = vadd.f32 %v254, %v292
      %v335 = vadd.f32 %v255, %v294
      %v336 = vadd.f32 %v256, %v296
      %v337 = vadd.f32 %v257, %v298
      %v338 = vadd.f32 %v258, %v300
      %v339 = vadd.f32 %v259, %v302
      %v340 = vadd.f32 %v260, %v304
      %v341 = vadd.f32 %v261, %v306
      %v342 = vadd.f32 %v262, %v308
      %v343 = vadd.f32 %v263, %v310
      %v344 = vadd.f32 %v264, %v312
      %361 = vrot.lane.b32.xlu0 %v329, 112
      %v362 = vpop.permute.xlu0 %361
      %363 = vrot.lane.b32.xlu0 %v330, 112
      %v364 = vpop.permute.xlu0 %363
      %365 = vrot.lane.b32.xlu0 %v331, 112
      %v366 = vpop.permute.xlu0 %365
      %367 = vrot.lane.b32.xlu0 %v332, 112
      %v368 = vpop.permute.xlu0 %367
      %369 = vrot.lane.b32.xlu0 %v333, 112
      %v370 = vpop.permute.xlu0 %369
      %371 = vrot.lane.b32.xlu0 %v334, 112
      %v372 = vpop.permute.xlu0 %371
      %373 = vrot.lane.b32.xlu0 %v335, 112
      %v374 = vpop.permute.xlu0 %373
      %375 = vrot.lane.b32.xlu0 %v336, 112
      %v376 = vpop.permute.xlu0 %375
      %377 = vrot.lane.b32.xlu0 %v337, 112
      %v378 = vpop.permute.xlu0 %377
      %379 = vrot.lane.b32.xlu0 %v338, 112
      %v380 = vpop.permute.xlu0 %379
      %381 = vrot.lane.b32.xlu0 %v339, 112
      %v382 = vpop.permute.xlu0 %381
      %383 = vrot.lane.b32.xlu0 %v340, 112
      %v384 = vpop.permute.xlu0 %383
      %385 = vrot.lane.b32.xlu0 %v341, 112
      %v386 = vpop.permute.xlu0 %385
      %387 = vrot.lane.b32.xlu0 %v342, 112
      %v388 = vpop.permute.xlu0 %387
      %389 = vrot.lane.b32.xlu0 %v343, 112
      %v390 = vpop.permute.xlu0 %389
      %391 = vrot.lane.b32.xlu0 %v344, 112
      %v392 = vpop.permute.xlu0 %391
      %v409 = vadd.f32 %v329, %v362
      %v410 = vadd.f32 %v330, %v364
      %v411 = vadd.f32 %v331, %v366
      %v412 = vadd.f32 %v332, %v368
      %v413 = vadd.f32 %v333, %v370
      %v414 = vadd.f32 %v334, %v372
      %v415 = vadd.f32 %v335, %v374
      %v416 = vadd.f32 %v336, %v376
      %v417 = vadd.f32 %v337, %v378
      %v418 = vadd.f32 %v338, %v380
      %v419 = vadd.f32 %v339, %v382
      %v420 = vadd.f32 %v340, %v384
      %v421 = vadd.f32 %v341, %v386
      %v422 = vadd.f32 %v342, %v388
      %v423 = vadd.f32 %v343, %v390
      %v424 = vadd.f32 %v344, %v392
      %441 = vrot.lane.b32.xlu0 %v409, 120
      %v442 = vpop.permute.xlu0 %441
      %443 = vrot.lane.b32.xlu0 %v410, 120
      %v444 = vpop.permute.xlu0 %443
      %445 = vrot.lane.b32.xlu0 %v411, 120
      %v446 = vpop.permute.xlu0 %445
      %447 = vrot.lane.b32.xlu0 %v412, 120
      %v448 = vpop.permute.xlu0 %447
      %449 = vrot.lane.b32.xlu0 %v413, 120
      %v450 = vpop.permute.xlu0 %449
      %451 = vrot.lane.b32.xlu0 %v414, 120
      %v452 = vpop.permute.xlu0 %451
      %453 = vrot.lane.b32.xlu0 %v415, 120
      %v454 = vpop.permute.xlu0 %453
      %455 = vrot.lane.b32.xlu0 %v416, 120
      %v456 = vpop.permute.xlu0 %455
      %457 = vrot.lane.b32.xlu0 %v417, 120
      %v458 = vpop.permute.xlu0 %457
      %459 = vrot.lane.b32.xlu0 %v418, 120
      %v460 = vpop.permute.xlu0 %459
      %461 = vrot.lane.b32.xlu0 %v419, 120
      %v462 = vpop.permute.xlu0 %461
      %463 = vrot.lane.b32.xlu0 %v420, 120
      %v464 = vpop.permute.xlu0 %463
      %465 = vrot.lane.b32.xlu0 %v421, 120
      %v466 = vpop.permute.xlu0 %465
      %467 = vrot.lane.b32.xlu0 %v422, 120
      %v468 = vpop.permute.xlu0 %467
      %469 = vrot.lane.b32.xlu0 %v423, 120
      %v470 = vpop.permute.xlu0 %469
      %471 = vrot.lane.b32.xlu0 %v424, 120
      %v472 = vpop.permute.xlu0 %471
      %v489 = vadd.f32 %v409, %v442
      %v490 = vadd.f32 %v410, %v444
      %v491 = vadd.f32 %v411, %v446
      %v492 = vadd.f32 %v412, %v448
      %v493 = vadd.f32 %v413, %v450
      %v494 = vadd.f32 %v414, %v452
      %v495 = vadd.f32 %v415, %v454
      %v496 = vadd.f32 %v416, %v456
      %v497 = vadd.f32 %v417, %v458
      %v498 = vadd.f32 %v418, %v460
      %v499 = vadd.f32 %v419, %v462
      %v500 = vadd.f32 %v420, %v464
      %v501 = vadd.f32 %v421, %v466
      %v502 = vadd.f32 %v422, %v468
      %v503 = vadd.f32 %v423, %v470
      %v504 = vadd.f32 %v424, %v472
      %521 = vrot.lane.b32.xlu0 %v489, 124
      %v522 = vpop.permute.xlu0 %521
      %523 = vrot.lane.b32.xlu0 %v490, 124
      %v524 = vpop.permute.xlu0 %523
      %525 = vrot.lane.b32.xlu0 %v491, 124
      %v526 = vpop.permute.xlu0 %525
      %527 = vrot.lane.b32.xlu0 %v492, 124
      %v528 = vpop.permute.xlu0 %527
      %529 = vrot.lane.b32.xlu0 %v493, 124
      %v530 = vpop.permute.xlu0 %529
      %531 = vrot.lane.b32.xlu0 %v494, 124
      %v532 = vpop.permute.xlu0 %531
      %533 = vrot.lane.b32.xlu0 %v495, 124
      %v534 = vpop.permute.xlu0 %533
      %535 = vrot.lane.b32.xlu0 %v496, 124
      %v536 = vpop.permute.xlu0 %535
      %537 = vrot.lane.b32.xlu0 %v497, 124
      %v538 = vpop.permute.xlu0 %537
      %539 = vrot.lane.b32.xlu0 %v498, 124
      %v540 = vpop.permute.xlu0 %539
      %541 = vrot.lane.b32.xlu0 %v499, 124
      %v542 = vpop.permute.xlu0 %541
      %543 = vrot.lane.b32.xlu0 %v500, 124
      %v544 = vpop.permute.xlu0 %543
      %545 = vrot.lane.b32.xlu0 %v501, 124
      %v546 = vpop.permute.xlu0 %545
      %547 = vrot.lane.b32.xlu0 %v502, 124
      %v548 = vpop.permute.xlu0 %547
      %549 = vrot.lane.b32.xlu0 %v503, 124
      %v550 = vpop.permute.xlu0 %549
      %551 = vrot.lane.b32.xlu0 %v504, 124
      %v552 = vpop.permute.xlu0 %551
      %v569 = vadd.f32 %v489, %v522
      %v570 = vadd.f32 %v490, %v524
      %v571 = vadd.f32 %v491, %v526
      %v572 = vadd.f32 %v492, %v528
      %v573 = vadd.f32 %v493, %v530
      %v574 = vadd.f32 %v494, %v532
      %v575 = vadd.f32 %v495, %v534
      %v576 = vadd.f32 %v496, %v536
      %v577 = vadd.f32 %v497, %v538
      %v578 = vadd.f32 %v498, %v540
      %v579 = vadd.f32 %v499, %v542
      %v580 = vadd.f32 %v500, %v544
      %v581 = vadd.f32 %v501, %v546
      %v582 = vadd.f32 %v502, %v548
      %v583 = vadd.f32 %v503, %v550
      %v584 = vadd.f32 %v504, %v552
      %v585 = vld [vmem:[%s161] sm:$0xff]
      %v586 = vld [vmem:[%s161 + $0x8] sm:$0xff]
      %v587 = vld [vmem:[%s161 + $0x10] sm:$0xff]
      %v588 = vld [vmem:[%s161 + $0x18] sm:$0xff]
      %v589 = vld [vmem:[%s161 + $0x20] sm:$0xff]
      %v590 = vld [vmem:[%s161 + $0x28] sm:$0xff]
      %v591 = vld [vmem:[%s161 + $0x30] sm:$0xff]
      %v592 = vld [vmem:[%s161 + $0x38] sm:$0xff]
      %v593 = vld [vmem:[%s161 + $0x40] sm:$0xff]
      %v594 = vld [vmem:[%s161 + $0x48] sm:$0xff]
      %v595 = vld [vmem:[%s161 + $0x50] sm:$0xff]
      %v596 = vld [vmem:[%s161 + $0x58] sm:$0xff]
      %v597 = vld [vmem:[%s161 + $0x60] sm:$0xff]
      %v598 = vld [vmem:[%s161 + $0x68] sm:$0xff]
      %v599 = vld [vmem:[%s161 + $0x70] sm:$0xff]
      %v600 = vld [vmem:[%s161 + $0x78] sm:$0xff]
      %v601 = vcvt.s32.f32 %v585
      %v602 = vcvt.s32.f32 %v586
      %v603 = vcvt.s32.f32 %v587
      %v604 = vcvt.s32.f32 %v588
      %v605 = vcvt.s32.f32 %v589
      %v606 = vcvt.s32.f32 %v590
      %v607 = vcvt.s32.f32 %v591
      %v608 = vcvt.s32.f32 %v592
      %v609 = vcvt.s32.f32 %v593
      %v610 = vcvt.s32.f32 %v594
      %v611 = vcvt.s32.f32 %v595
      %v612 = vcvt.s32.f32 %v596
      %v613 = vcvt.s32.f32 %v597
      %v614 = vcvt.s32.f32 %v598
      %v615 = vcvt.s32.f32 %v599
      %v616 = vcvt.s32.f32 %v600
      %v617 = vrcp.pop %v601
      %v618 = vrcp.pop %v602
      %v619 = vrcp.pop %v603
      %v620 = vrcp.pop %v604
      %v621 = vrcp.pop %v605
      %v622 = vrcp.pop %v606
      %v623 = vrcp.pop %v607
      %v624 = vrcp.pop %v608
      %v625 = vrcp.pop %v609
      %v626 = vrcp.pop %v610
      %v627 = vrcp.pop %v611
      %v628 = vrcp.pop %v612
      %v629 = vrcp.pop %v613
      %v630 = vrcp.pop %v614
      %v631 = vrcp.pop %v615
      %v632 = vrcp.pop %v616
      %634 = vset.pattern.permute.xlu0 0
      %635 = vperm.xlu0 %634, %v617
      %v636 = vpop.permute.xlu0 %635
      %639 = vset.pattern.permute.xlu0 0
      %640 = vperm.xlu0 %639, %v618
      %v641 = vpop.permute.xlu0 %640
      %644 = vset.pattern.permute.xlu0 0
      %645 = vperm.xlu0 %644, %v619
      %v646 = vpop.permute.xlu0 %645
      %649 = vset.pattern.permute.xlu0 0
      %650 = vperm.xlu0 %649, %v620
      %v651 = vpop.permute.xlu0 %650
      %654 = vset.pattern.permute.xlu0 0
      %655 = vperm.xlu0 %654, %v621
      %v656 = vpop.permute.xlu0 %655
      %659 = vset.pattern.permute.xlu0 0
      %660 = vperm.xlu0 %659, %v622
      %v661 = vpop.permute.xlu0 %660
      %664 = vset.pattern.permute.xlu0 0
      %665 = vperm.xlu0 %664, %v623
      %v666 = vpop.permute.xlu0 %665
      %669 = vset.pattern.permute.xlu0 0
      %670 = vperm.xlu0 %669, %v624
      %v671 = vpop.permute.xlu0 %670
      %674 = vset.pattern.permute.xlu0 0
      %675 = vperm.xlu0 %674, %v625
      %v676 = vpop.permute.xlu0 %675
      %679 = vset.pattern.permute.xlu0 0
      %680 = vperm.xlu0 %679, %v626
      %v681 = vpop.permute.xlu0 %680
      %684 = vset.pattern.permute.xlu0 0
      %685 = vperm.xlu0 %684, %v627
      %v686 = vpop.permute.xlu0 %685
      %689 = vset.pattern.permute.xlu0 0
      %690 = vperm.xlu0 %689, %v628
      %v691 = vpop.permute.xlu0 %690
      %694 = vset.pattern.permute.xlu0 0
      %695 = vperm.xlu0 %694, %v629
      %v696 = vpop.permute.xlu0 %695
      %699 = vset.pattern.permute.xlu0 0
      %700 = vperm.xlu0 %699, %v630
      %v701 = vpop.permute.xlu0 %700
      %704 = vset.pattern.permute.xlu0 0
      %705 = vperm.xlu0 %704, %v631
      %v706 = vpop.permute.xlu0 %705
      %709 = vset.pattern.permute.xlu0 0
      %710 = vperm.xlu0 %709, %v632
      %v711 = vpop.permute.xlu0 %710
      %v713 = vmul.f32 %v569, %v636
      %v714 = vmul.f32 %v570, %v641
      %v715 = vmul.f32 %v571, %v646
      %v716 = vmul.f32 %v572, %v651
      %v717 = vmul.f32 %v573, %v656
      %v718 = vmul.f32 %v574, %v661
      %v719 = vmul.f32 %v575, %v666
      %v720 = vmul.f32 %v576, %v671
      %v721 = vmul.f32 %v577, %v676
      %v722 = vmul.f32 %v578, %v681
      %v723 = vmul.f32 %v579, %v686
      %v724 = vmul.f32 %v580, %v691
      %v725 = vmul.f32 %v581, %v696
      %v726 = vmul.f32 %v582, %v701
      %v727 = vmul.f32 %v583, %v706
      %v728 = vmul.f32 %v584, %v711
      %vm729 = vcmask 31744
      %730 = vst.msk [vmem:[%s167] sm:$0xff] %vm729, %v713
      %731 = vst.msk [vmem:[%s167 + $0x8] sm:$0xff] %vm729, %v714
      %732 = vst.msk [vmem:[%s167 + $0x10] sm:$0xff] %vm729, %v715
      %733 = vst.msk [vmem:[%s167 + $0x18] sm:$0xff] %vm729, %v716
      %734 = vst.msk [vmem:[%s167 + $0x20] sm:$0xff] %vm729, %v717
      %735 = vst.msk [vmem:[%s167 + $0x28] sm:$0xff] %vm729, %v718
      %736 = vst.msk [vmem:[%s167 + $0x30] sm:$0xff] %vm729, %v719
      %737 = vst.msk [vmem:[%s167 + $0x38] sm:$0xff] %vm729, %v720
      %738 = vst.msk [vmem:[%s167 + $0x40] sm:$0xff] %vm729, %v721
      %739 = vst.msk [vmem:[%s167 + $0x48] sm:$0xff] %vm729, %v722
      %740 = vst.msk [vmem:[%s167 + $0x50] sm:$0xff] %vm729, %v723
      %741 = vst.msk [vmem:[%s167 + $0x58] sm:$0xff] %vm729, %v724
      %742 = vst.msk [vmem:[%s167 + $0x60] sm:$0xff] %vm729, %v725
      %743 = vst.msk [vmem:[%s167 + $0x68] sm:$0xff] %vm729, %v726
      %744 = vst.msk [vmem:[%s167 + $0x70] sm:$0xff] %vm729, %v727
      %745 = vst.msk [vmem:[%s167 + $0x78] sm:$0xff] %vm729, %v728
      %s746 = smul.u32 16, %s13
      %p747 = scmp.lt.s32.totalorder %s746, 31
      %s748 = scalar_select %p747, %s746, 31
      %s749 = smul.addr %s748, 8
      %s750 = scalar_lea.vmem %s2, %s749
      // Predicated region
      $region29: #{tpu_custom_call.1} parent=27 // pred_check
        %p751 = pneg %p83
      $region30: #{tpu_custom_call.1} parent=27 // pred_check_branch
        %753 = sbr.rel (%p751) target = $region32
      $region31: #{tpu_custom_call.1} parent=27 // pred_region
        %s754 = smul.u32 16, %s13
      $region32: #{tpu_custom_call.1} parent=27 // pred_fallthru
        _
    $region28: #{tpu_custom_call.1} parent=5 // pred_fallthru
      _
    %p755 = scmp.le.s32.totalorder 2, %s8
    // Predicated region
    $region33: #{tpu_custom_call.1} parent=5 // pred_check
      %p756 = pneg %p755
    $region34: #{tpu_custom_call.1} parent=5 // pred_check_branch
      %758 = sbr.rel (%p756) target = $region36
    $region35: #{tpu_custom_call.1} parent=5 // pred_region
      %s759 = ssub.s32 %s8, 2
      // Predicated region
      $region37: #{tpu_custom_call.1} parent=35 // pred_check
        %p760 = pneg %p89
      $region38: #{tpu_custom_call.1} parent=35 // pred_check_branch
        %762 = sbr.rel (%p760) target = $region40
      $region39: #{tpu_custom_call.1} parent=35 // pred_region
        %s763 = smul.u32 16, %s14
        %p764 = scmp.lt.s32.totalorder %s763, 31
        %s765 = scalar_select %p764, %s763, 31
        %s766 = smul.addr %s765, 8
        %s767 = scalar_lea.vmem %s2, %s766
      $region40: #{tpu_custom_call.1} parent=35 // pred_fallthru
        _
    $region36: #{tpu_custom_call.1} parent=5 // pred_fallthru
      _
  $region6: #{tpu_custom_call.1} parent=0 // loop_footer
    %s12 = sadd.s32 1, %s8
  $region7: #{tpu_custom_call.1} parent=0 // loop_footer_branch
    %7 = sbr.rel target = $region3
  $region8: #{tpu_custom_call.1} parent=0 // loop_exit
    _

</llo_original>
